<compile_context>
chip_gen: v5e
topology: v5e:2x2
jax: 0.10.0
libtpu: 0.0.40
codegen_flags: <defaults>
</compile_context>

<pallas_src>
import jax
import jax.numpy as jnp
from jax.experimental import pallas as pl
from jax.experimental.pallas import tpu as pltpu

HIDDEN = 768
NUM_CLASSES = 2
P_DROP = 0.1


def _head_kernel(x_ref, w_ref, b_ref, o_ref):
    """Eval path: logits = x @ W + b (f32 accumulation on the MXU)."""
    logits = jnp.dot(x_ref[...], w_ref[...], preferred_element_type=jnp.float32)
    o_ref[...] = logits + b_ref[...].astype(jnp.float32)


def _head_dropout_kernel(x_ref, m_ref, w_ref, b_ref, o_ref):
    """Train path: mask holds 0/1 in x's dtype; (x*mask) @ W, then the
    1/(1-p) dropout rescale is applied to the tiny [TB, 2] f32 accumulator."""
    x = x_ref[...] * m_ref[...]
    logits = jnp.dot(x, w_ref[...], preferred_element_type=jnp.float32)
    logits = logits * jnp.float32(1.0 / (1.0 - P_DROP))
    o_ref[...] = logits + b_ref[...].astype(jnp.float32)


def _round_up(x, m):
    return (x + m - 1) // m * m


def fn_cls_head(pooled, weight_io, bias_row, *, keep_mask=None):
    """pooled: [B, 768]; weight_io: [768, 2]; bias_row: [1, 2] -> [B, 2] f32 logits.

    keep_mask: optional [B, 768] 0/1 dropout keep-mask (training mode). None = eval.
    """
    B, H = pooled.shape
    assert H == HIDDEN
    assert weight_io.shape == (HIDDEN, NUM_CLASSES)
    assert bias_row.shape == (1, NUM_CLASSES)

    # Row tile: multiple of 8 (sublane), capped at 1024 so double-buffered bf16
    # tiles stay well inside v7x's 64 MiB VMEM / 32 MiB scoped default.
    TB = min(1024, _round_up(B, 8))
    B_pad = _round_up(B, TB)
    if B_pad != B:
        pooled = jnp.pad(pooled, ((0, B_pad - B), (0, 0)))
        if keep_mask is not None:
            keep_mask = jnp.pad(keep_mask, ((0, B_pad - B), (0, 0)))
    nb = B_pad // TB

    x_spec = pl.BlockSpec((TB, HIDDEN), lambda i: (i, 0))
    w_spec = pl.BlockSpec((HIDDEN, NUM_CLASSES), lambda i: (0, 0))
    b_spec = pl.BlockSpec((1, NUM_CLASSES), lambda i: (0, 0))
    o_spec = pl.BlockSpec((TB, NUM_CLASSES), lambda i: (i, 0))

    if keep_mask is None:
        kernel = _head_kernel
        in_specs = [x_spec, w_spec, b_spec]
        args = (pooled, weight_io, bias_row)
    else:
        kernel = _head_dropout_kernel
        m_spec = pl.BlockSpec((TB, HIDDEN), lambda i: (i, 0))
        in_specs = [x_spec, m_spec, w_spec, b_spec]
        args = (pooled, keep_mask.astype(pooled.dtype), weight_io, bias_row)

    out = pl.pallas_call(
        kernel,
        out_shape=jax.ShapeDtypeStruct((B_pad, NUM_CLASSES), jnp.float32),
        grid_spec=pltpu.PrefetchScalarGridSpec(
            num_scalar_prefetch=0,
            grid=(nb,),
            in_specs=in_specs,
            out_specs=o_spec,
        ),
        compiler_params=pltpu.CompilerParams(
            dimension_semantics=("parallel",)),
    )(*args)
    return out[:B]


if __name__ == "__main__":
    key = jax.random.PRNGKey(0)
    k_x, k_w, k_b, k_m = jax.random.split(key, 4)

    B = 2  # small batch
    # Deterministic stand-in for BigBird pooled output outputs[1] (shape [B, 768]).
    pooled_f32 = jax.random.normal(k_x, (B, HIDDEN), dtype=jnp.float32)

    # Deterministic init of nn.Linear(768, 2): W ~ [2, 768], b ~ [2].
    w = jax.random.normal(k_w, (NUM_CLASSES, HIDDEN), dtype=jnp.float32) * 0.02
    b = jax.random.normal(k_b, (NUM_CLASSES,), dtype=jnp.float32) * 0.02

    # bf16 activations/weights (halves HBM traffic on the mem-bound x read);
    # bias and accumulation stay f32.
    pooled = pooled_f32.astype(jnp.bfloat16)
    w_io = jnp.transpose(w).astype(jnp.bfloat16)   # [768, 2]
    b_row = b.reshape(1, NUM_CLASSES)              # [1, 2] f32

    # Eval mode (dropout = identity), matches PyTorch inference semantics.
    logits = fn_cls_head(pooled, w_io, b_row)
    jax.block_until_ready(logits)
    ref = pooled.astype(jnp.float32) @ w_io.astype(jnp.float32) + b
    assert logits.shape == (B, NUM_CLASSES)
    assert jnp.allclose(logits, ref, atol=1e-2, rtol=1e-2), "eval mismatch vs reference"

    # Training mode: dropout keep-mask generated host-side with jax.random
    # (avoids in-kernel pltpu.prng_* so the kernel also runs under interpret mode).
    keep = jax.random.bernoulli(k_m, 1.0 - P_DROP, (B, HIDDEN)).astype(jnp.bfloat16)
    logits_tr = fn_cls_head(pooled, w_io, b_row, keep_mask=keep)
    jax.block_until_ready(logits_tr)
    ref_tr = ((pooled * keep).astype(jnp.float32) @ w_io.astype(jnp.float32)
              ) * (1.0 / (1.0 - P_DROP)) + b
    assert logits_tr.shape == (B, NUM_CLASSES)
    assert jnp.allclose(logits_tr, ref_tr, atol=1e-2, rtol=1e-2), "train mismatch vs reference"

    print("KERNEL_OK")
</pallas_src>

<mosaic_0001>
module attributes {stable_mosaic.version = 11 : i64} {
  func.func @_head_kernel(%arg0: i32, %arg1: memref<8x768xbf16, #tpu.memory_space<vmem>>, %arg2: memref<768x2xbf16, #tpu.memory_space<vmem>>, %arg3: memref<1x2xf32, #tpu.memory_space<vmem>>, %arg4: memref<8x2xf32, #tpu.memory_space<vmem>>) attributes {dimension_semantics = [#tpu.dimension_semantics<parallel>], iteration_bounds = array<i64: 1>, scalar_prefetch = 0 : i64, scratch_operands = 0 : i64, tpu.core_type = #tpu.core_type<tc>, window_params = [{transform_indices = @transform_0, window_bounds = array<i64: 8, 768>}, {pipeline_mode = #tpu.pipeline_mode<synchronous>, transform_indices = @transform_1, window_bounds = array<i64: 768, 2>}, {pipeline_mode = #tpu.pipeline_mode<synchronous>, transform_indices = @transform_2, window_bounds = array<i64: 1, 2>}, {transform_indices = @transform_3, window_bounds = array<i64: 8, 2>}]} {
    %c0 = arith.constant 0 : index
    %c0_0 = arith.constant 0 : index
    %0 = vector.load %arg1[%c0, %c0_0] : memref<8x768xbf16, #tpu.memory_space<vmem>>, vector<8x768xbf16>
    %c0_1 = arith.constant 0 : index
    %c0_2 = arith.constant 0 : index
    %1 = vector.load %arg2[%c0_1, %c0_2] : memref<768x2xbf16, #tpu.memory_space<vmem>>, vector<768x2xbf16>
    %cst = arith.constant dense<0.000000e+00> : vector<8x2xf32>
    %2 = tpu.matmul %0, %1, %cst {dimension_numbers = #tpu.dot_dimension_numbers<[1], [0], [0], [1], [0, 0, 1, 1], [], []>} : vector<8x768xbf16>, vector<768x2xbf16>, vector<8x2xf32> -> vector<8x2xf32>
    %c0_3 = arith.constant 0 : index
    %c0_4 = arith.constant 0 : index
    %3 = vector.load %arg3[%c0_3, %c0_4] : memref<1x2xf32, #tpu.memory_space<vmem>>, vector<1x2xf32>
    %4 = vector.broadcast %3 : vector<1x2xf32> to vector<8x2xf32>
    %5 = arith.addf %2, %4 : vector<8x2xf32>
    %c0_5 = arith.constant 0 : index
    %c0_6 = arith.constant 0 : index
    %6 = vector.load %arg4[%c0_5, %c0_6] : memref<8x2xf32, #tpu.memory_space<vmem>>, vector<8x2xf32>
    tpu.vector_store %arg4[%c0_5, %c0_6], %5 {strides = array<i32>} : memref<8x2xf32, #tpu.memory_space<vmem>>, vector<8x2xf32>,
    return
  }
  func.func @transform_0(%arg0: i32) -> (i32, i32) {
    %c0_i32 = arith.constant 0 : i32
    %c0_i32_0 = arith.constant 0 : i32
    return %arg0, %c0_i32 : i32, i32
  }
  func.func @transform_1(%arg0: i32) -> (i32, i32) {
    %c0_i32 = arith.constant 0 : i32
    %c0_i32_0 = arith.constant 0 : i32
    %c0_i32_1 = arith.constant 0 : i32
    return %c0_i32, %c0_i32_0 : i32, i32
  }
  func.func @transform_2(%arg0: i32) -> (i32, i32) {
    %c0_i32 = arith.constant 0 : i32
    %c0_i32_0 = arith.constant 0 : i32
    %c0_i32_1 = arith.constant 0 : i32
    return %c0_i32, %c0_i32_0 : i32, i32
  }
  func.func @transform_3(%arg0: i32) -> (i32, i32) {
    %c0_i32 = arith.constant 0 : i32
    %c0_i32_0 = arith.constant 0 : i32
    return %arg0, %c0_i32 : i32, i32
  }
}

</mosaic_0001>

<llo_original>
// kernel: tpu_custom_call.1
$region0: #{tpu_custom_call.1}
  #allocation0 [shape = 'u32[]', space=smem, size = 0x4, offset = 0x4, fixed_abs, tag = 'smem constant byte address 0x4 - core index']
  #allocation1 [shape = 'u32[72,128]{1,0:T(1,128)}', space=vmem, size = 0x9000, scoped, tag = 'internal scratch']
  %s0 = inlined_call_operand.vmem [shape: bf16[8,768], index: 0, kind: input, shape index: {}]
  %s1 = inlined_call_operand.vmem [shape: bf16[768,2], index: 1, kind: input, shape index: {}]
  %s2 = inlined_call_operand.vmem [shape: f32[1,2], index: 2, kind: input, shape index: {}]
  %s3 = inlined_call_operand.vmem [shape: f32[8,2], index: 3, kind: output, shape index: {}]
  %s4 = sld [smem:[#allocation0]]
  $region22: #{tpu_custom_call.1} parent=0
    _
  %s6 = ssub.s32 1, %s4
  %s7 = scalar_select 0, %s6, %s4
  // Predicated region
  $region2: #{tpu_custom_call.1} parent=0 // pred_check
    _
  $region3: #{tpu_custom_call.1} parent=0 // pred_check_branch
    %9 = sbr.rel (0) target = $region5
  $region4: #{tpu_custom_call.1} parent=0 // pred_region
    _
  $region5: #{tpu_custom_call.1} parent=0 // pred_fallthru
    _
  // Predicated region
  $region6: #{tpu_custom_call.1} parent=0 // pred_check
    _
  $region7: #{tpu_custom_call.1} parent=0 // pred_check_branch
    %11 = sbr.rel (0) target = $region9
  $region8: #{tpu_custom_call.1} parent=0 // pred_region
    _
  $region9: #{tpu_custom_call.1} parent=0 // pred_fallthru
    _
  // Predicated region
  $region10: #{tpu_custom_call.1} parent=0 // pred_check
    _
  $region11: #{tpu_custom_call.1} parent=0 // pred_check_branch
    %13 = sbr.rel (0) target = $region13
  $region12: #{tpu_custom_call.1} parent=0 // pred_region
    _
  $region13: #{tpu_custom_call.1} parent=0 // pred_fallthru
    _
  %v14 = vld [vmem:[%s0] sm:$0xff]
  %v15 = vld [vmem:[%s0 + $0x8] sm:$0xff]
  %v16 = vld [vmem:[%s0 + $0x10] sm:$0xff]
  %v17 = vld [vmem:[%s1] sm:$0xf]
  %v18 = vld [vmem:[%s1 + $0x4] sm:$0xf]
  %v19 = vld [vmem:[%s1 + $0x8] sm:$0xf]
  %v20 = vld [vmem:[%s1 + $0xc] sm:$0xf]
  %v21 = vld [vmem:[%s1 + $0x10] sm:$0xf]
  %v22 = vld [vmem:[%s1 + $0x14] sm:$0xf]
  %v23 = vld [vmem:[%s1 + $0x18] sm:$0xf]
  %v24 = vld [vmem:[%s1 + $0x1c] sm:$0xf]
  %v25 = vld [vmem:[%s1 + $0x20] sm:$0xf]
  %v26 = vld [vmem:[%s1 + $0x24] sm:$0xf]
  %v27 = vld [vmem:[%s1 + $0x28] sm:$0xf]
  %v28 = vld [vmem:[%s1 + $0x2c] sm:$0xf]
  %v29 = vld [vmem:[%s1 + $0x30] sm:$0xf]
  %v30 = vld [vmem:[%s1 + $0x34] sm:$0xf]
  %v31 = vld [vmem:[%s1 + $0x38] sm:$0xf]
  %v32 = vld [vmem:[%s1 + $0x3c] sm:$0xf]
  %v33 = vld [vmem:[%s1 + $0x40] sm:$0xf]
  %v34 = vld [vmem:[%s1 + $0x44] sm:$0xf]
  %v35 = vld [vmem:[%s1 + $0x48] sm:$0xf]
  %v36 = vld [vmem:[%s1 + $0x4c] sm:$0xf]
  %v37 = vld [vmem:[%s1 + $0x50] sm:$0xf]
  %v38 = vld [vmem:[%s1 + $0x54] sm:$0xf]
  %v39 = vld [vmem:[%s1 + $0x58] sm:$0xf]
  %v40 = vld [vmem:[%s1 + $0x5c] sm:$0xf]
  %v41 = vld [vmem:[%s1 + $0x60] sm:$0xf]
  %v42 = vld [vmem:[%s1 + $0x64] sm:$0xf]
  %v43 = vld [vmem:[%s1 + $0x68] sm:$0xf]
  %v44 = vld [vmem:[%s1 + $0x6c] sm:$0xf]
  %v45 = vld [vmem:[%s1 + $0x70] sm:$0xf]
  %v46 = vld [vmem:[%s1 + $0x74] sm:$0xf]
  %v47 = vld [vmem:[%s1 + $0x78] sm:$0xf]
  %v48 = vld [vmem:[%s1 + $0x7c] sm:$0xf]
  %v49 = vld [vmem:[%s1 + $0x80] sm:$0xf]
  %v50 = vld [vmem:[%s1 + $0x84] sm:$0xf]
  %v51 = vld [vmem:[%s1 + $0x88] sm:$0xf]
  %v52 = vld [vmem:[%s1 + $0x8c] sm:$0xf]
  %v53 = vld [vmem:[%s1 + $0x90] sm:$0xf]
  %v54 = vld [vmem:[%s1 + $0x94] sm:$0xf]
  %v55 = vld [vmem:[%s1 + $0x98] sm:$0xf]
  %v56 = vld [vmem:[%s1 + $0x9c] sm:$0xf]
  %v57 = vld [vmem:[%s1 + $0xa0] sm:$0xf]
  %v58 = vld [vmem:[%s1 + $0xa4] sm:$0xf]
  %v59 = vld [vmem:[%s1 + $0xa8] sm:$0xf]
  %v60 = vld [vmem:[%s1 + $0xac] sm:$0xf]
  %v61 = vld [vmem:[%s1 + $0xb0] sm:$0xf]
  %v62 = vld [vmem:[%s1 + $0xb4] sm:$0xf]
  %v63 = vld [vmem:[%s1 + $0xb8] sm:$0xf]
  %v64 = vld [vmem:[%s1 + $0xbc] sm:$0xf]
  %v65 = vld [vmem:[%s1 + $0xc0] sm:$0xf]
  %v66 = vld [vmem:[%s1 + $0xc4] sm:$0xf]
  %v67 = vld [vmem:[%s1 + $0xc8] sm:$0xf]
  %v68 = vld [vmem:[%s1 + $0xcc] sm:$0xf]
  %v69 = vld [vmem:[%s1 + $0xd0] sm:$0xf]
  %v70 = vld [vmem:[%s1 + $0xd4] sm:$0xf]
  %v71 = vld [vmem:[%s1 + $0xd8] sm:$0xf]
  %v72 = vld [vmem:[%s1 + $0xdc] sm:$0xf]
  %v73 = vld [vmem:[%s1 + $0xe0] sm:$0xf]
  %v74 = vld [vmem:[%s1 + $0xe4] sm:$0xf]
  %v75 = vld [vmem:[%s1 + $0xe8] sm:$0xf]
  %v76 = vld [vmem:[%s1 + $0xec] sm:$0xf]
  %v77 = vld [vmem:[%s1 + $0xf0] sm:$0xf]
  %v78 = vld [vmem:[%s1 + $0xf4] sm:$0xf]
  %v79 = vld [vmem:[%s1 + $0xf8] sm:$0xf]
  %v80 = vld [vmem:[%s1 + $0xfc] sm:$0xf]
  %v81 = vld [vmem:[%s1 + $0x100] sm:$0xf]
  %v82 = vld [vmem:[%s1 + $0x104] sm:$0xf]
  %v83 = vld [vmem:[%s1 + $0x108] sm:$0xf]
  %v84 = vld [vmem:[%s1 + $0x10c] sm:$0xf]
  %v85 = vld [vmem:[%s1 + $0x110] sm:$0xf]
  %v86 = vld [vmem:[%s1 + $0x114] sm:$0xf]
  %v87 = vld [vmem:[%s1 + $0x118] sm:$0xf]
  %v88 = vld [vmem:[%s1 + $0x11c] sm:$0xf]
  %v89 = vld [vmem:[%s1 + $0x120] sm:$0xf]
  %v90 = vld [vmem:[%s1 + $0x124] sm:$0xf]
  %v91 = vld [vmem:[%s1 + $0x128] sm:$0xf]
  %v92 = vld [vmem:[%s1 + $0x12c] sm:$0xf]
  %v93 = vld [vmem:[%s1 + $0x130] sm:$0xf]
  %v94 = vld [vmem:[%s1 + $0x134] sm:$0xf]
  %v95 = vld [vmem:[%s1 + $0x138] sm:$0xf]
  %v96 = vld [vmem:[%s1 + $0x13c] sm:$0xf]
  %v97 = vld [vmem:[%s1 + $0x140] sm:$0xf]
  %v98 = vld [vmem:[%s1 + $0x144] sm:$0xf]
  %v99 = vld [vmem:[%s1 + $0x148] sm:$0xf]
  %v100 = vld [vmem:[%s1 + $0x14c] sm:$0xf]
  %v101 = vld [vmem:[%s1 + $0x150] sm:$0xf]
  %v102 = vld [vmem:[%s1 + $0x154] sm:$0xf]
  %v103 = vld [vmem:[%s1 + $0x158] sm:$0xf]
  %v104 = vld [vmem:[%s1 + $0x15c] sm:$0xf]
  %v105 = vld [vmem:[%s1 + $0x160] sm:$0xf]
  %v106 = vld [vmem:[%s1 + $0x164] sm:$0xf]
  %v107 = vld [vmem:[%s1 + $0x168] sm:$0xf]
  %v108 = vld [vmem:[%s1 + $0x16c] sm:$0xf]
  %v109 = vld [vmem:[%s1 + $0x170] sm:$0xf]
  %v110 = vld [vmem:[%s1 + $0x174] sm:$0xf]
  %v111 = vld [vmem:[%s1 + $0x178] sm:$0xf]
  %v112 = vld [vmem:[%s1 + $0x17c] sm:$0xf]
  %v113 = vld [vmem:[%s2] sm:$0x1]
  %v115 = vperm.slane %v113, 0
  %v120 = vunpack.c.l.b16 %v14
  %v121 = vunpack.c.h.b16 %v14
  %v122 = vunpack.c.l.b16 %v15
  %v123 = vunpack.c.h.b16 %v15
  %v124 = vunpack.c.l.b16 %v16
  %v125 = vunpack.c.h.b16 %v16
  %v126 = vpack.c.b16 %v120, %v120
  %v127 = vpack.c.b16 %v121, %v121
  %v128 = vpack.c.b16 %v122, %v122
  %v129 = vpack.c.b16 %v123, %v123
  %v130 = vpack.c.b16 %v124, %v124
  %v131 = vpack.c.b16 %v125, %v125
  %v234 = vunpack.c.l.b16 %v17
  %v235 = vunpack.c.l.b16 %v18
  %v236 = vunpack.c.l.b16 %v19
  %v237 = vunpack.c.l.b16 %v20
  %v238 = vunpack.c.l.b16 %v21
  %v239 = vunpack.c.l.b16 %v22
  %v240 = vunpack.c.l.b16 %v23
  %v241 = vunpack.c.l.b16 %v24
  %v242 = vunpack.c.l.b16 %v25
  %v243 = vunpack.c.l.b16 %v26
  %v244 = vunpack.c.l.b16 %v27
  %v245 = vunpack.c.l.b16 %v28
  %v246 = vunpack.c.l.b16 %v29
  %v247 = vunpack.c.l.b16 %v30
  %v248 = vunpack.c.l.b16 %v31
  %v249 = vunpack.c.l.b16 %v32
  %v250 = vunpack.c.l.b16 %v33
  %v251 = vunpack.c.l.b16 %v34
  %v252 = vunpack.c.l.b16 %v35
  %v253 = vunpack.c.l.b16 %v36
  %v254 = vunpack.c.l.b16 %v37
  %v255 = vunpack.c.l.b16 %v38
  %v256 = vunpack.c.l.b16 %v39
  %v257 = vunpack.c.l.b16 %v40
  %v258 = vunpack.c.l.b16 %v41
  %v259 = vunpack.c.l.b16 %v42
  %v260 = vunpack.c.l.b16 %v43
  %v261 = vunpack.c.l.b16 %v44
  %v262 = vunpack.c.l.b16 %v45
  %v263 = vunpack.c.l.b16 %v46
  %v264 = vunpack.c.l.b16 %v47
  %v265 = vunpack.c.l.b16 %v48
  %v266 = vunpack.c.l.b16 %v49
  %v267 = vunpack.c.l.b16 %v50
  %v268 = vunpack.c.l.b16 %v51
  %v269 = vunpack.c.l.b16 %v52
  %v270 = vunpack.c.l.b16 %v53
  %v271 = vunpack.c.l.b16 %v54
  %v272 = vunpack.c.l.b16 %v55
  %v273 = vunpack.c.l.b16 %v56
  %v274 = vunpack.c.l.b16 %v57
  %v275 = vunpack.c.l.b16 %v58
  %v276 = vunpack.c.l.b16 %v59
  %v277 = vunpack.c.l.b16 %v60
  %v278 = vunpack.c.l.b16 %v61
  %v279 = vunpack.c.l.b16 %v62
  %v280 = vunpack.c.l.b16 %v63
  %v281 = vunpack.c.l.b16 %v64
  %v282 = vunpack.c.l.b16 %v65
  %v283 = vunpack.c.l.b16 %v66
  %v284 = vunpack.c.l.b16 %v67
  %v285 = vunpack.c.l.b16 %v68
  %v286 = vunpack.c.l.b16 %v69
  %v287 = vunpack.c.l.b16 %v70
  %v288 = vunpack.c.l.b16 %v71
  %v289 = vunpack.c.l.b16 %v72
  %v290 = vunpack.c.l.b16 %v73
  %v291 = vunpack.c.l.b16 %v74
  %v292 = vunpack.c.l.b16 %v75
  %v293 = vunpack.c.l.b16 %v76
  %v294 = vunpack.c.l.b16 %v77
  %v295 = vunpack.c.l.b16 %v78
  %v296 = vunpack.c.l.b16 %v79
  %v297 = vunpack.c.l.b16 %v80
  %v298 = vunpack.c.l.b16 %v81
  %v299 = vunpack.c.l.b16 %v82
  %v300 = vunpack.c.l.b16 %v83
  %v301 = vunpack.c.l.b16 %v84
  %v302 = vunpack.c.l.b16 %v85
  %v303 = vunpack.c.l.b16 %v86
  %v304 = vunpack.c.l.b16 %v87
  %v305 = vunpack.c.l.b16 %v88
  %v306 = vunpack.c.l.b16 %v89
  %v307 = vunpack.c.l.b16 %v90
  %v308 = vunpack.c.l.b16 %v91
  %v309 = vunpack.c.l.b16 %v92
  %v310 = vunpack.c.l.b16 %v93
  %v311 = vunpack.c.l.b16 %v94
  %v312 = vunpack.c.l.b16 %v95
  %v313 = vunpack.c.l.b16 %v96
  %v314 = vunpack.c.l.b16 %v97
  %v315 = vunpack.c.l.b16 %v98
  %v316 = vunpack.c.l.b16 %v99
  %v317 = vunpack.c.l.b16 %v100
  %v318 = vunpack.c.l.b16 %v101
  %v319 = vunpack.c.l.b16 %v102
  %v320 = vunpack.c.l.b16 %v103
  %v321 = vunpack.c.l.b16 %v104
  %v322 = vunpack.c.l.b16 %v105
  %v323 = vunpack.c.l.b16 %v106
  %v324 = vunpack.c.l.b16 %v107
  %v325 = vunpack.c.l.b16 %v108
  %v326 = vunpack.c.l.b16 %v109
  %v327 = vunpack.c.l.b16 %v110
  %v328 = vunpack.c.l.b16 %v111
  %v329 = vunpack.c.l.b16 %v112
  %v330 = vpack.c.b16 %v235, %v234
  %v331 = vpack.c.b16 %v237, %v236
  %v332 = vpack.c.b16 %v239, %v238
  %v333 = vpack.c.b16 %v241, %v240
  %v334 = vpack.c.b16 %v243, %v242
  %v335 = vpack.c.b16 %v245, %v244
  %v336 = vpack.c.b16 %v247, %v246
  %v337 = vpack.c.b16 %v249, %v248
  %v338 = vpack.c.b16 %v251, %v250
  %v339 = vpack.c.b16 %v253, %v252
  %v340 = vpack.c.b16 %v255, %v254
  %v341 = vpack.c.b16 %v257, %v256
  %v342 = vpack.c.b16 %v259, %v258
  %v343 = vpack.c.b16 %v261, %v260
  %v344 = vpack.c.b16 %v263, %v262
  %v345 = vpack.c.b16 %v265, %v264
  %v346 = vpack.c.b16 %v267, %v266
  %v347 = vpack.c.b16 %v269, %v268
  %v348 = vpack.c.b16 %v271, %v270
  %v349 = vpack.c.b16 %v273, %v272
  %v350 = vpack.c.b16 %v275, %v274
  %v351 = vpack.c.b16 %v277, %v276
  %v352 = vpack.c.b16 %v279, %v278
  %v353 = vpack.c.b16 %v281, %v280
  %v354 = vpack.c.b16 %v283, %v282
  %v355 = vpack.c.b16 %v285, %v284
  %v356 = vpack.c.b16 %v287, %v286
  %v357 = vpack.c.b16 %v289, %v288
  %v358 = vpack.c.b16 %v291, %v290
  %v359 = vpack.c.b16 %v293, %v292
  %v360 = vpack.c.b16 %v295, %v294
  %v361 = vpack.c.b16 %v297, %v296
  %v362 = vpack.c.b16 %v299, %v298
  %v363 = vpack.c.b16 %v301, %v300
  %v364 = vpack.c.b16 %v303, %v302
  %v365 = vpack.c.b16 %v305, %v304
  %v366 = vpack.c.b16 %v307, %v306
  %v367 = vpack.c.b16 %v309, %v308
  %v368 = vpack.c.b16 %v311, %v310
  %v369 = vpack.c.b16 %v313, %v312
  %v370 = vpack.c.b16 %v315, %v314
  %v371 = vpack.c.b16 %v317, %v316
  %v372 = vpack.c.b16 %v319, %v318
  %v373 = vpack.c.b16 %v321, %v320
  %v374 = vpack.c.b16 %v323, %v322
  %v375 = vpack.c.b16 %v325, %v324
  %v376 = vpack.c.b16 %v327, %v326
  %v377 = vpack.c.b16 %v329, %v328
  %426 = vmatpush.bf16.msra.mxu0 %v337
  %427 = vmatpush.bf16.msra.mxu0 %v336
  %428 = vmatpush.bf16.msra.mxu0 %v335
  %429 = vmatpush.bf16.msra.mxu0 %v334
  %430 = vmatpush.bf16.msra.mxu0 %v333
  %431 = vmatpush.bf16.msra.mxu0 %v332
  %432 = vmatpush.bf16.msra.mxu0 %v331
  %433 = vmatpush.bf16.msra.mxu0 %v330
  %434 = vmatmul.bf16.gmra.mxu0 %v126
  %v435 = vpop.f32.mrf.mxu0
  %v436 = vadd.f32 %v115, %v435
  %v437 = vpop.f32.mrf.mxu0
  %438 = vdwg.mxu0
  %439 = vmatpush.bf16.msra.mxu0 %v345
  %440 = vmatpush.bf16.msra.mxu0 %v344
  %441 = vmatpush.bf16.msra.mxu0 %v343
  %442 = vmatpush.bf16.msra.mxu0 %v342
  %443 = vmatpush.bf16.msra.mxu0 %v341
  %444 = vmatpush.bf16.msra.mxu0 %v340
  %445 = vmatpush.bf16.msra.mxu0 %v339
  %446 = vmatpush.bf16.msra.mxu0 %v338
  %447 = vmatmul.bf16.gmra.mxu0 %v127
  %v448 = vpop.f32.mrf.mxu0
  %v449 = vadd.f32 %v436, %v448
  %v450 = vpop.f32.mrf.mxu0
  %451 = vdwg.mxu0
  %452 = vmatpush.bf16.msra.mxu0 %v353
  %453 = vmatpush.bf16.msra.mxu0 %v352
  %454 = vmatpush.bf16.msra.mxu0 %v351
  %455 = vmatpush.bf16.msra.mxu0 %v350
  %456 = vmatpush.bf16.msra.mxu0 %v349
  %457 = vmatpush.bf16.msra.mxu0 %v348
  %458 = vmatpush.bf16.msra.mxu0 %v347
  %459 = vmatpush.bf16.msra.mxu0 %v346
  %460 = vmatmul.bf16.gmra.mxu0 %v128
  %v461 = vpop.f32.mrf.mxu0
  %v462 = vadd.f32 %v449, %v461
  %v463 = vpop.f32.mrf.mxu0
  %464 = vdwg.mxu0
  %465 = vmatpush.bf16.msra.mxu0 %v361
  %466 = vmatpush.bf16.msra.mxu0 %v360
  %467 = vmatpush.bf16.msra.mxu0 %v359
  %468 = vmatpush.bf16.msra.mxu0 %v358
  %469 = vmatpush.bf16.msra.mxu0 %v357
  %470 = vmatpush.bf16.msra.mxu0 %v356
  %471 = vmatpush.bf16.msra.mxu0 %v355
  %472 = vmatpush.bf16.msra.mxu0 %v354
  %473 = vmatmul.bf16.gmra.mxu0 %v129
  %v474 = vpop.f32.mrf.mxu0
  %v475 = vadd.f32 %v462, %v474
  %v476 = vpop.f32.mrf.mxu0
  %477 = vdwg.mxu0
  %478 = vmatpush.bf16.msra.mxu0 %v369
  %479 = vmatpush.bf16.msra.mxu0 %v368
  %480 = vmatpush.bf16.msra.mxu0 %v367
  %481 = vmatpush.bf16.msra.mxu0 %v366
  %482 = vmatpush.bf16.msra.mxu0 %v365
  %483 = vmatpush.bf16.msra.mxu0 %v364
  %484 = vmatpush.bf16.msra.mxu0 %v363
  %485 = vmatpush.bf16.msra.mxu0 %v362
  %486 = vmatmul.bf16.gmra.mxu0 %v130
  %v487 = vpop.f32.mrf.mxu0
  %v488 = vadd.f32 %v475, %v487
  %v489 = vpop.f32.mrf.mxu0
  %490 = vdwg.mxu0
  %491 = vmatpush.bf16.msra.mxu0 %v377
  %492 = vmatpush.bf16.msra.mxu0 %v376
  %493 = vmatpush.bf16.msra.mxu0 %v375
  %494 = vmatpush.bf16.msra.mxu0 %v374
  %495 = vmatpush.bf16.msra.mxu0 %v373
  %496 = vmatpush.bf16.msra.mxu0 %v372
  %497 = vmatpush.bf16.msra.mxu0 %v371
  %498 = vmatpush.bf16.msra.mxu0 %v370
  %499 = vmatmul.bf16.gmra.mxu0 %v131
  %v500 = vpop.f32.mrf.mxu0
  %v501 = vadd.f32 %v488, %v500
  %v502 = vpop.f32.mrf.mxu0
  %503 = vdwg.mxu0
  %vm504 = vcmask 15360
  %505 = vst.msk [vmem:[%s3] sm:$0xff] %vm504, %v501
  // Predicated region
  $region14: #{tpu_custom_call.1} parent=0 // pred_check
    _
  $region15: #{tpu_custom_call.1} parent=0 // pred_check_branch
    %507 = sbr.rel (0) target = $region17
  $region16: #{tpu_custom_call.1} parent=0 // pred_region
    _
  $region17: #{tpu_custom_call.1} parent=0 // pred_fallthru
    _
  // Predicated region
  $region18: #{tpu_custom_call.1} parent=0 // pred_check
    _
  $region19: #{tpu_custom_call.1} parent=0 // pred_check_branch
    %509 = sbr.rel (0) target = $region21
  $region20: #{tpu_custom_call.1} parent=0 // pred_region
    _
  $region21: #{tpu_custom_call.1} parent=0 // pred_fallthru
    _

</llo_original>
